<compile_context>
chip_gen: v7x
topology: tpu7x:2x2x1
jax: 0.10.0
libtpu: 0.0.40
codegen_flags: <defaults>
</compile_context>

<pallas_src>
import functools

import jax
import jax.numpy as jnp
from jax.experimental import pallas as pl
from jax.experimental.pallas import tpu as pltpu


def _tap_shift(t, img_w):
    """Flat lane shift of tap t (t = kh*3 + kw). Single source of truth for
    the tap ordering shared by the wrapper (weights/mask) and the kernel."""
    kh, kw = divmod(t, 3)
    return (kh - 1) * img_w + (kw - 1)


def _zero_conv2d_kernel(x_ref, w_ref, m_ref, wb_ref, b_ref, o_ref, *, img_w):
    # x_ref : (B, Cin, L)    B images, spatial flattened into lanes
    # w_ref : (9, Cout, Cin) gain-folded weights (compute dtype), tap-major
    # m_ref : (9, L)         per-tap source-validity mask, f32
    # wb_ref: (Cout, 9)      gain-folded per-tap weight sums (border term), f32
    # b_ref : (Cout, 1)      gain-folded bias, f32
    # o_ref : (B, Cout, L)
    n_img, _, L = x_ref.shape

    mask = m_ref[...]                                        # (9, L) f32
    mask_rows = [mask[t:t + 1, :] for t in range(9)]         # each (1, L)
    w_taps = [w_ref[t] for t in range(9)]                    # each (Cout, Cin)
    w_dtype = w_taps[0].dtype

    # Constant part shared by every image in this step:
    # value-1 border contribution + bias (both already gain-folded).
    const = jnp.dot(wb_ref[...], 1.0 - mask,
                    preferred_element_type=jnp.float32) + b_ref[...]   # (Cout, L)

    for b in range(n_img):
        xb = x_ref[b]                                        # (Cin, L)
        acc = const
        for t in range(9):
            s = _tap_shift(t, img_w)
            if s == 0:
                xt = xb                                      # centre tap
            else:
                # Circular lane rotate (XLU); wrapped lanes are zeroed by the
                # per-tap mask (see invariant in the header comment).
                xt = pltpu.roll(xb, shift=(-s) % L, axis=1)
            if t != 4:                                       # centre mask == 1
                xt = xt * mask_rows[t]                       # f32 VPU multiply
            # Accumulating per-tap MXU dot, f32 accumulation.
            acc = acc + jnp.dot(w_taps[t], xt.astype(w_dtype),
                                preferred_element_type=jnp.float32)
        o_ref[b] = acc.astype(o_ref.dtype)


def _choose_block_n(N, Cin, Cout, L):
    """Images per grid step.

    Amortises the ~0.35us per-grid-step overhead while (a) keeping the
    double-buffered in/out tiles well under the scoped-VMEM default on every
    chip (16 MiB v5e / 32 MiB v6e,v7x), (b) keeping >=2 grid steps whenever N
    allows it so both v7x TensorCores get work, and (c) bounding in-kernel
    unrolling.
    """
    bytes_per_img = 2 * (Cin + Cout) * L * 4          # double-buffered, f32
    budget = 8 * 1024 * 1024
    b = max(1, min(N, budget // max(bytes_per_img, 1), 8))
    if N >= 2:
        b = min(b, N // 2)
    while N % b:
        b -= 1
    return b


def zero_conv2d(x_nchw, weight_oihw, bias, scale, *, compute_dtype=jnp.float32,
                block_n=None):
    """ZeroConv2d forward. x: (N, Cin, H, W) NCHW; returns (N, Cout, H, W).

    compute_dtype: dtype of the MXU matmul operands. jnp.bfloat16 is the fast
    path on v6e/v7x (accumulation stays f32); keep f32 for bit-accuracy.
    """
    N, Cin, H, W = x_nchw.shape
    Cout = weight_oihw.shape[0]
    L = H * W

    # ---- parameter-only preprocessing (tiny, once per call, in XLA) -------
    g = jnp.exp(scale.reshape(-1).astype(jnp.float32) * 3.0)            # (Cout,)
    wg = weight_oihw.astype(jnp.float32) * g[:, None, None, None]       # (Cout,Cin,3,3)

    # Tap-major weights: (9, Cout, Cin), tap t = kh*3 + kw (see _tap_shift).
    w_taps = jnp.transpose(wg, (2, 3, 0, 1)).reshape(9, Cout, Cin)
    w_taps = w_taps.astype(compute_dtype)

    # Per-tap weight sums (gain-folded) for the value-1 border term.
    wb = wg.sum(axis=1).reshape(Cout, 9)                                 # (Cout, 9)
    bias_g = (bias.astype(jnp.float32).reshape(-1) * g).reshape(Cout, 1)

    # Per-tap validity over output positions: 1 where the tap reads a real
    # pixel, 0 where it would read the constant-1 border.  (9, L), broadcast
    # over Cin inside the kernel.
    ii = jnp.arange(H)
    jj = jnp.arange(W)
    rows = []
    for t in range(9):
        kh, kw = divmod(t, 3)
        rok = (ii + (kh - 1) >= 0) & (ii + (kh - 1) < H)                 # (H,)
        cok = (jj + (kw - 1) >= 0) & (jj + (kw - 1) < W)                 # (W,)
        rows.append((rok[:, None] & cok[None, :]).reshape(L))
    valid = jnp.stack(rows).astype(jnp.float32)                          # (9, L)

    # Free reshape: no pad / no transpose of the activation.
    x_flat = x_nchw.reshape(N, Cin, L)

    if block_n is None:
        block_n = _choose_block_n(N, Cin, Cout, L)
    grid = (N // block_n,)

    kernel = functools.partial(_zero_conv2d_kernel, img_w=W)
    out_flat = pl.pallas_call(
        kernel,
        out_shape=jax.ShapeDtypeStruct((N, Cout, L), x_nchw.dtype),
        grid=grid,
        in_specs=[
            pl.BlockSpec((block_n, Cin, L), lambda n: (n, 0, 0)),
            pl.BlockSpec((9, Cout, Cin), lambda n: (0, 0, 0)),
            pl.BlockSpec((9, L), lambda n: (0, 0)),
            pl.BlockSpec((Cout, 9), lambda n: (0, 0)),
            pl.BlockSpec((Cout, 1), lambda n: (0, 0)),
        ],
        out_specs=pl.BlockSpec((block_n, Cout, L), lambda n: (n, 0, 0)),
        compiler_params=pltpu.CompilerParams(
            dimension_semantics=("parallel",),
            vmem_limit_bytes=32 * 1024 * 1024,
        ),
    )(x_flat, w_taps, valid, wb, bias_g)

    return out_flat.reshape(N, Cout, H, W)


def zero_conv2d_reference(x_nchw, weight_oihw, bias, scale):
    """Pure-JAX reference mirroring the PyTorch forward exactly (NCHW)."""
    xp = jnp.pad(x_nchw, ((0, 0), (0, 0), (1, 1), (1, 1)), constant_values=1.0)
    out = jax.lax.conv_general_dilated(
        xp, weight_oihw, window_strides=(1, 1), padding="VALID",
        dimension_numbers=("NCHW", "OIHW", "NCHW"))
    out = out + bias[None, :, None, None]
    out = out * jnp.exp(scale.reshape(1, -1, 1, 1) * 3.0)
    return out


if __name__ == "__main__":
    # Small shapes consistent with the module: NCHW input.
    N, Cin, Cout, H, W = 2, 4, 8, 16, 16

    key = jax.random.PRNGKey(0)
    kx, kw_, kb, ks = jax.random.split(key, 4)

    x = jax.random.normal(kx, (N, Cin, H, W), dtype=jnp.float32)
    # The module zero-inits these; use small deterministic values so the math
    # is actually exercised.
    weight = 0.05 * jax.random.normal(kw_, (Cout, Cin, 3, 3), dtype=jnp.float32)
    bias = 0.01 * jax.random.normal(kb, (Cout,), dtype=jnp.float32)
    scale = 0.1 * jax.random.normal(ks, (1, Cout, 1, 1), dtype=jnp.float32)

    ref = zero_conv2d_reference(x, weight, bias, scale)

    # f32 MXU operands: bit-accurate path.
    out = jax.block_until_ready(zero_conv2d(x, weight, bias, scale))
    assert out.shape == (N, Cout, H, W)
    assert jnp.allclose(out, ref, atol=1e-5, rtol=1e-5), "f32 kernel mismatch"

    # bf16 MXU operands (fast path on v6e/v7x); accumulation stays f32.
    out_bf16 = jax.block_until_ready(
        zero_conv2d(x, weight, bias, scale, compute_dtype=jnp.bfloat16))
    assert out_bf16.shape == (N, Cout, H, W)
    assert jnp.allclose(out_bf16, ref, atol=5e-2, rtol=5e-2), "bf16 kernel mismatch"

    print("KERNEL_OK")
</pallas_src>

<mosaic_0001>
module attributes {stable_mosaic.version = 11 : i64} {
  func.func @_zero_conv2d_kernel(%arg0: i32, %arg1: memref<1x4x256xf32, #tpu.memory_space<vmem>>, %arg2: memref<9x8x4xf32, #tpu.memory_space<vmem>>, %arg3: memref<9x256xf32, #tpu.memory_space<vmem>>, %arg4: memref<8x9xf32, #tpu.memory_space<vmem>>, %arg5: memref<8x1xf32, #tpu.memory_space<vmem>>, %arg6: memref<1x8x256xf32, #tpu.memory_space<vmem>>) attributes {dimension_semantics = [#tpu.dimension_semantics<parallel>], iteration_bounds = array<i64: 2>, scalar_prefetch = 0 : i64, scratch_operands = 0 : i64, tpu.core_type = #tpu.core_type<tc>, window_params = [{transform_indices = @transform_0, window_bounds = array<i64: 1, 4, 256>}, {pipeline_mode = #tpu.pipeline_mode<synchronous>, transform_indices = @transform_1, window_bounds = array<i64: 9, 8, 4>}, {pipeline_mode = #tpu.pipeline_mode<synchronous>, transform_indices = @transform_2, window_bounds = array<i64: 9, 256>}, {pipeline_mode = #tpu.pipeline_mode<synchronous>, transform_indices = @transform_3, window_bounds = array<i64: 8, 9>}, {pipeline_mode = #tpu.pipeline_mode<synchronous>, transform_indices = @transform_4, window_bounds = array<i64: 8, 1>}, {transform_indices = @transform_5, window_bounds = array<i64: 1, 8, 256>}]} {
    %c0 = arith.constant 0 : index
    %c0_0 = arith.constant 0 : index
    %0 = vector.load %arg3[%c0, %c0_0] : memref<9x256xf32, #tpu.memory_space<vmem>>, vector<9x256xf32>
    %1 = vector.extract_strided_slice %0 {offsets = [0, 0], sizes = [1, 256], strides = [1, 1]} : vector<9x256xf32> to vector<1x256xf32>
    %2 = vector.extract_strided_slice %0 {offsets = [1, 0], sizes = [1, 256], strides = [1, 1]} : vector<9x256xf32> to vector<1x256xf32>
    %3 = vector.extract_strided_slice %0 {offsets = [2, 0], sizes = [1, 256], strides = [1, 1]} : vector<9x256xf32> to vector<1x256xf32>
    %4 = vector.extract_strided_slice %0 {offsets = [3, 0], sizes = [1, 256], strides = [1, 1]} : vector<9x256xf32> to vector<1x256xf32>
    %5 = vector.extract_strided_slice %0 {offsets = [5, 0], sizes = [1, 256], strides = [1, 1]} : vector<9x256xf32> to vector<1x256xf32>
    %6 = vector.extract_strided_slice %0 {offsets = [6, 0], sizes = [1, 256], strides = [1, 1]} : vector<9x256xf32> to vector<1x256xf32>
    %7 = vector.extract_strided_slice %0 {offsets = [7, 0], sizes = [1, 256], strides = [1, 1]} : vector<9x256xf32> to vector<1x256xf32>
    %8 = vector.extract_strided_slice %0 {offsets = [8, 0], sizes = [1, 256], strides = [1, 1]} : vector<9x256xf32> to vector<1x256xf32>
    %c0_1 = arith.constant 0 : index
    %c0_2 = arith.constant 0 : index
    %c0_3 = arith.constant 0 : index
    %9 = vector.load %arg2[%c0_1, %c0_2, %c0_3] : memref<9x8x4xf32, #tpu.memory_space<vmem>>, vector<1x8x4xf32>
    %10 = vector.shape_cast %9 : vector<1x8x4xf32> to vector<8x4xf32>
    %c1 = arith.constant 1 : index
    %c0_4 = arith.constant 0 : index
    %c0_5 = arith.constant 0 : index
    %11 = vector.load %arg2[%c1, %c0_4, %c0_5] : memref<9x8x4xf32, #tpu.memory_space<vmem>>, vector<1x8x4xf32>
    %12 = vector.shape_cast %11 : vector<1x8x4xf32> to vector<8x4xf32>
    %c2 = arith.constant 2 : index
    %c0_6 = arith.constant 0 : index
    %c0_7 = arith.constant 0 : index
    %13 = vector.load %arg2[%c2, %c0_6, %c0_7] : memref<9x8x4xf32, #tpu.memory_space<vmem>>, vector<1x8x4xf32>
    %14 = vector.shape_cast %13 : vector<1x8x4xf32> to vector<8x4xf32>
    %c3 = arith.constant 3 : index
    %c0_8 = arith.constant 0 : index
    %c0_9 = arith.constant 0 : index
    %15 = vector.load %arg2[%c3, %c0_8, %c0_9] : memref<9x8x4xf32, #tpu.memory_space<vmem>>, vector<1x8x4xf32>
    %16 = vector.shape_cast %15 : vector<1x8x4xf32> to vector<8x4xf32>
    %c4 = arith.constant 4 : index
    %c0_10 = arith.constant 0 : index
    %c0_11 = arith.constant 0 : index
    %17 = vector.load %arg2[%c4, %c0_10, %c0_11] : memref<9x8x4xf32, #tpu.memory_space<vmem>>, vector<1x8x4xf32>
    %18 = vector.shape_cast %17 : vector<1x8x4xf32> to vector<8x4xf32>
    %c5 = arith.constant 5 : index
    %c0_12 = arith.constant 0 : index
    %c0_13 = arith.constant 0 : index
    %19 = vector.load %arg2[%c5, %c0_12, %c0_13] : memref<9x8x4xf32, #tpu.memory_space<vmem>>, vector<1x8x4xf32>
    %20 = vector.shape_cast %19 : vector<1x8x4xf32> to vector<8x4xf32>
    %c6 = arith.constant 6 : index
    %c0_14 = arith.constant 0 : index
    %c0_15 = arith.constant 0 : index
    %21 = vector.load %arg2[%c6, %c0_14, %c0_15] : memref<9x8x4xf32, #tpu.memory_space<vmem>>, vector<1x8x4xf32>
    %22 = vector.shape_cast %21 : vector<1x8x4xf32> to vector<8x4xf32>
    %c7 = arith.constant 7 : index
    %c0_16 = arith.constant 0 : index
    %c0_17 = arith.constant 0 : index
    %23 = vector.load %arg2[%c7, %c0_16, %c0_17] : memref<9x8x4xf32, #tpu.memory_space<vmem>>, vector<1x8x4xf32>
    %24 = vector.shape_cast %23 : vector<1x8x4xf32> to vector<8x4xf32>
    %c8 = arith.constant 8 : index
    %c0_18 = arith.constant 0 : index
    %c0_19 = arith.constant 0 : index
    %25 = vector.load %arg2[%c8, %c0_18, %c0_19] : memref<9x8x4xf32, #tpu.memory_space<vmem>>, vector<1x8x4xf32>
    %26 = vector.shape_cast %25 : vector<1x8x4xf32> to vector<8x4xf32>
    %c0_20 = arith.constant 0 : index
    %c0_21 = arith.constant 0 : index
    %27 = vector.load %arg4[%c0_20, %c0_21] : memref<8x9xf32, #tpu.memory_space<vmem>>, vector<8x9xf32>
    %cst = arith.constant 1.000000e+00 : f32
    %28 = vector.broadcast %cst : f32 to vector<9x256xf32>
    %29 = arith.subf %28, %0 : vector<9x256xf32>
    %cst_22 = arith.constant dense<0.000000e+00> : vector<8x256xf32>
    %30 = tpu.matmul %27, %29, %cst_22 {dimension_numbers = #tpu.dot_dimension_numbers<[1], [0], [0], [1], [0, 0, 1, 1], [], []>} : vector<8x9xf32>, vector<9x256xf32>, vector<8x256xf32> -> vector<8x256xf32>
    %c0_23 = arith.constant 0 : index
    %c0_24 = arith.constant 0 : index
    %31 = vector.load %arg5[%c0_23, %c0_24] : memref<8x1xf32, #tpu.memory_space<vmem>>, vector<8x1xf32>
    %32 = vector.broadcast %31 : vector<8x1xf32> to vector<8x256xf32>
    %33 = arith.addf %30, %32 : vector<8x256xf32>
    %c0_25 = arith.constant 0 : index
    %c0_26 = arith.constant 0 : index
    %c0_27 = arith.constant 0 : index
    %34 = vector.load %arg1[%c0_25, %c0_26, %c0_27] : memref<1x4x256xf32, #tpu.memory_space<vmem>>, vector<1x4x256xf32>
    %35 = vector.shape_cast %34 : vector<1x4x256xf32> to vector<4x256xf32>
    %c17_i32 = arith.constant 17 : i32
    %36 = tpu.dynamic_rotate %35 by %c17_i32 dim 1 : vector<4x256xf32>, i32 -> vector<4x256xf32>
    %37 = vector.broadcast %1 : vector<1x256xf32> to vector<4x256xf32>
    %38 = arith.mulf %36, %37 : vector<4x256xf32>
    %cst_28 = arith.constant dense<0.000000e+00> : vector<8x256xf32>
    %39 = tpu.matmul %10, %38, %cst_28 {dimension_numbers = #tpu.dot_dimension_numbers<[1], [0], [0], [1], [0, 0, 1, 1], [], []>} : vector<8x4xf32>, vector<4x256xf32>, vector<8x256xf32> -> vector<8x256xf32>
    %40 = arith.addf %33, %39 : vector<8x256xf32>
    %c16_i32 = arith.constant 16 : i32
    %41 = tpu.dynamic_rotate %35 by %c16_i32 dim 1 : vector<4x256xf32>, i32 -> vector<4x256xf32>
    %42 = vector.broadcast %2 : vector<1x256xf32> to vector<4x256xf32>
    %43 = arith.mulf %41, %42 : vector<4x256xf32>
    %cst_29 = arith.constant dense<0.000000e+00> : vector<8x256xf32>
    %44 = tpu.matmul %12, %43, %cst_29 {dimension_numbers = #tpu.dot_dimension_numbers<[1], [0], [0], [1], [0, 0, 1, 1], [], []>} : vector<8x4xf32>, vector<4x256xf32>, vector<8x256xf32> -> vector<8x256xf32>
    %45 = arith.addf %40, %44 : vector<8x256xf32>
    %c15_i32 = arith.constant 15 : i32
    %46 = tpu.dynamic_rotate %35 by %c15_i32 dim 1 : vector<4x256xf32>, i32 -> vector<4x256xf32>
    %47 = vector.broadcast %3 : vector<1x256xf32> to vector<4x256xf32>
    %48 = arith.mulf %46, %47 : vector<4x256xf32>
    %cst_30 = arith.constant dense<0.000000e+00> : vector<8x256xf32>
    %49 = tpu.matmul %14, %48, %cst_30 {dimension_numbers = #tpu.dot_dimension_numbers<[1], [0], [0], [1], [0, 0, 1, 1], [], []>} : vector<8x4xf32>, vector<4x256xf32>, vector<8x256xf32> -> vector<8x256xf32>
    %50 = arith.addf %45, %49 : vector<8x256xf32>
    %c1_i32 = arith.constant 1 : i32
    %51 = tpu.dynamic_rotate %35 by %c1_i32 dim 1 : vector<4x256xf32>, i32 -> vector<4x256xf32>
    %52 = vector.broadcast %4 : vector<1x256xf32> to vector<4x256xf32>
    %53 = arith.mulf %51, %52 : vector<4x256xf32>
    %cst_31 = arith.constant dense<0.000000e+00> : vector<8x256xf32>
    %54 = tpu.matmul %16, %53, %cst_31 {dimension_numbers = #tpu.dot_dimension_numbers<[1], [0], [0], [1], [0, 0, 1, 1], [], []>} : vector<8x4xf32>, vector<4x256xf32>, vector<8x256xf32> -> vector<8x256xf32>
    %55 = arith.addf %50, %54 : vector<8x256xf32>
    %cst_32 = arith.constant dense<0.000000e+00> : vector<8x256xf32>
    %56 = tpu.matmul %18, %35, %cst_32 {dimension_numbers = #tpu.dot_dimension_numbers<[1], [0], [0], [1], [0, 0, 1, 1], [], []>} : vector<8x4xf32>, vector<4x256xf32>, vector<8x256xf32> -> vector<8x256xf32>
    %57 = arith.addf %55, %56 : vector<8x256xf32>
    %c255_i32 = arith.constant 255 : i32
    %58 = tpu.dynamic_rotate %35 by %c255_i32 dim 1 : vector<4x256xf32>, i32 -> vector<4x256xf32>
    %59 = vector.broadcast %5 : vector<1x256xf32> to vector<4x256xf32>
    %60 = arith.mulf %58, %59 : vector<4x256xf32>
    %cst_33 = arith.constant dense<0.000000e+00> : vector<8x256xf32>
    %61 = tpu.matmul %20, %60, %cst_33 {dimension_numbers = #tpu.dot_dimension_numbers<[1], [0], [0], [1], [0, 0, 1, 1], [], []>} : vector<8x4xf32>, vector<4x256xf32>, vector<8x256xf32> -> vector<8x256xf32>
    %62 = arith.addf %57, %61 : vector<8x256xf32>
    %c241_i32 = arith.constant 241 : i32
    %63 = tpu.dynamic_rotate %35 by %c241_i32 dim 1 : vector<4x256xf32>, i32 -> vector<4x256xf32>
    %64 = vector.broadcast %6 : vector<1x256xf32> to vector<4x256xf32>
    %65 = arith.mulf %63, %64 : vector<4x256xf32>
    %cst_34 = arith.constant dense<0.000000e+00> : vector<8x256xf32>
    %66 = tpu.matmul %22, %65, %cst_34 {dimension_numbers = #tpu.dot_dimension_numbers<[1], [0], [0], [1], [0, 0, 1, 1], [], []>} : vector<8x4xf32>, vector<4x256xf32>, vector<8x256xf32> -> vector<8x256xf32>
    %67 = arith.addf %62, %66 : vector<8x256xf32>
    %c240_i32 = arith.constant 240 : i32
    %68 = tpu.dynamic_rotate %35 by %c240_i32 dim 1 : vector<4x256xf32>, i32 -> vector<4x256xf32>
    %69 = vector.broadcast %7 : vector<1x256xf32> to vector<4x256xf32>
    %70 = arith.mulf %68, %69 : vector<4x256xf32>
    %cst_35 = arith.constant dense<0.000000e+00> : vector<8x256xf32>
    %71 = tpu.matmul %24, %70, %cst_35 {dimension_numbers = #tpu.dot_dimension_numbers<[1], [0], [0], [1], [0, 0, 1, 1], [], []>} : vector<8x4xf32>, vector<4x256xf32>, vector<8x256xf32> -> vector<8x256xf32>
    %72 = arith.addf %67, %71 : vector<8x256xf32>
    %c239_i32 = arith.constant 239 : i32
    %73 = tpu.dynamic_rotate %35 by %c239_i32 dim 1 : vector<4x256xf32>, i32 -> vector<4x256xf32>
    %74 = vector.broadcast %8 : vector<1x256xf32> to vector<4x256xf32>
    %75 = arith.mulf %73, %74 : vector<4x256xf32>
    %cst_36 = arith.constant dense<0.000000e+00> : vector<8x256xf32>
    %76 = tpu.matmul %26, %75, %cst_36 {dimension_numbers = #tpu.dot_dimension_numbers<[1], [0], [0], [1], [0, 0, 1, 1], [], []>} : vector<8x4xf32>, vector<4x256xf32>, vector<8x256xf32> -> vector<8x256xf32>
    %77 = arith.addf %72, %76 : vector<8x256xf32>
    %c0_37 = arith.constant 0 : index
    %c0_38 = arith.constant 0 : index
    %c0_39 = arith.constant 0 : index
    %78 = vector.load %arg6[%c0_37, %c0_38, %c0_39] : memref<1x8x256xf32, #tpu.memory_space<vmem>>, vector<1x8x256xf32>
    %79 = vector.shape_cast %78 : vector<1x8x256xf32> to vector<8x256xf32>
    %80 = vector.shape_cast %77 : vector<8x256xf32> to vector<1x8x256xf32>
    tpu.vector_store %arg6[%c0_37, %c0_38, %c0_39], %80 {strides = array<i32>} : memref<1x8x256xf32, #tpu.memory_space<vmem>>, vector<1x8x256xf32>,
    return
  }
  func.func @transform_0(%arg0: i32) -> (i32, i32, i32) {
    %c0_i32 = arith.constant 0 : i32
    %c0_i32_0 = arith.constant 0 : i32
    %c0_i32_1 = arith.constant 0 : i32
    return %arg0, %c0_i32, %c0_i32_0 : i32, i32, i32
  }
  func.func @transform_1(%arg0: i32) -> (i32, i32, i32) {
    %c0_i32 = arith.constant 0 : i32
    %c0_i32_0 = arith.constant 0 : i32
    %c0_i32_1 = arith.constant 0 : i32
    %c0_i32_2 = arith.constant 0 : i32
    return %c0_i32, %c0_i32_0, %c0_i32_1 : i32, i32, i32
  }
  func.func @transform_2(%arg0: i32) -> (i32, i32) {
    %c0_i32 = arith.constant 0 : i32
    %c0_i32_0 = arith.constant 0 : i32
    %c0_i32_1 = arith.constant 0 : i32
    return %c0_i32, %c0_i32_0 : i32, i32
  }
  func.func @transform_3(%arg0: i32) -> (i32, i32) {
    %c0_i32 = arith.constant 0 : i32
    %c0_i32_0 = arith.constant 0 : i32
    %c0_i32_1 = arith.constant 0 : i32
    return %c0_i32, %c0_i32_0 : i32, i32
  }
  func.func @transform_4(%arg0: i32) -> (i32, i32) {
    %c0_i32 = arith.constant 0 : i32
    %c0_i32_0 = arith.constant 0 : i32
    %c0_i32_1 = arith.constant 0 : i32
    return %c0_i32, %c0_i32_0 : i32, i32
  }
  func.func @transform_5(%arg0: i32) -> (i32, i32, i32) {
    %c0_i32 = arith.constant 0 : i32
    %c0_i32_0 = arith.constant 0 : i32
    %c0_i32_1 = arith.constant 0 : i32
    return %arg0, %c0_i32, %c0_i32_0 : i32, i32, i32
  }
}

</mosaic_0001>

<llo_original>
// kernel: tpu_custom_call.1
$region0: #{tpu_custom_call.1}
  #allocation0 [shape = 'u32[]', space=smem, size = 0x4, offset = 0x4, fixed_abs, tag = 'smem constant byte address 0x4 - core index']
  #allocation1 [shape = 'u32[144,128]{1,0:T(1,128)}', space=vmem, size = 0x12000, scoped, tag = 'internal scratch']
  %s0 = inlined_call_operand.vmem [shape: f32[2,4,256], index: 0, kind: input, shape index: {}]
  %s1 = inlined_call_operand.vmem [shape: f32[9,8,4], index: 1, kind: input, shape index: {}]
  %s2 = inlined_call_operand.vmem [shape: f32[9,256], index: 2, kind: input, shape index: {}]
  %s3 = inlined_call_operand.vmem [shape: f32[8,9], index: 3, kind: input, shape index: {}]
  %s4 = inlined_call_operand.vmem [shape: f32[8,1], index: 4, kind: input, shape index: {}]
  %s5 = inlined_call_operand.hbm [shape: f32[2,8,256], index: 5, kind: output, shape index: {}]
  %s6 = sld [smem:[#allocation0]]
  $region53: #{tpu_custom_call.1} parent=0
    _
  %s8 = ssub.s32 1, %s6
  %s9 = scalar_select 0, %s8, %s6
  $region1: #{tpu_custom_call.1} parent=0
    #allocation2 [shape = 'u8[16384]{0}', space=vmem, size = 0x4000, scoped, tag = 'output window, operand 0']
    #allocation3 [shape = 's32[2]{0}', space=sflag, size = 0x8, scoped, tag = 'scoped memory for tpu_custom_call.1']
    %10 = vsyncpa [#allocation3], 0
    %s11 = scalar_lea.sflag [#allocation3], 1
    %12 = vsyncpa %s11, 0
    loop: start=0, step=1, limit=4
    $region2: #{tpu_custom_call.1} parent=1 // loop_pre_header
      _
    $region3: #{tpu_custom_call.1} parent=1 // loop_header
      %s14 = sphi 0, %s18
      %p15 = scmp.ge.s32.totalorder %s14, 4
      %s24 = sphi 0, %s26
      %s27 = sphi 0, %s24
      %s28 = sphi 0, %s27
      %s44 = sphi 0, %s28
      %s48 = sphi 0, %s48
      %s50 = sphi 0, %s48
      %s51 = sphi 0, %s50
      %s65 = sphi 0, %s51
      %s69 = sphi 0, %s69
      %s71 = sphi 0, %s69
      %s72 = sphi 0, %s71
      %s86 = sphi 0, %s72
      %s90 = sphi 0, %s90
      %s92 = sphi 0, %s90
      %s93 = sphi 0, %s92
      %s107 = sphi 0, %s93
      %s111 = sphi 0, %s111
      %s113 = sphi 0, %s111
      %s114 = sphi 0, %s113
      %s128 = sphi 0, %s114
      %s134 = sphi 0, %s136
      %s137 = sphi 0, %s134
      %s138 = sphi 0, %s137
      %s154 = sphi 0, %s138
    $region4: #{tpu_custom_call.1} parent=1 // loop_header_branch
      %17 = sbr.rel (%p15) target = $region8
    $region5: #{tpu_custom_call.1} parent=1 // loop_body
      %s19 = ssub.s32 %s14, 1
      %s20 = ssub.s32 %s14, 2
      %s21 = sadd.s32 %s14, 1
      %s22 = ssub.s32 %s14, %s21
      %p23 = scmp.eq.s32.totalorder %s22, 0
      %s25 = sadd.s32 %s24, 1
      %s26 = scalar_select %p23, %s24, %s25
      %p29 = pneg %p23
      %p30 = scmp.eq.s32.totalorder %s14, 1
      %p31 = por %p29, %p30
      %p32 = scmp.ne.s32.totalorder %s24, %s27
      %p33 = scmp.eq.s32.totalorder %s14, 0
      %p34 = por %p32, %p33
      %p35 = scmp.ne.s32.totalorder %s24, %s27
      %p36 = scmp.eq.s32.totalorder %s19, 1
      %p37 = por %p35, %p36
      %p38 = scmp.ne.s32.totalorder %s27, %s28
      %p39 = scmp.eq.s32.totalorder %s19, 0
      %p40 = por %p38, %p39
      %p41 = scmp.ne.s32.totalorder %s27, %s28
      %p42 = scmp.eq.s32.totalorder %s20, 1
      %p43 = por %p41, %p42
      %p45 = scmp.ne.s32.totalorder %s28, %s44
      %p46 = scmp.eq.s32.totalorder %s20, 0
      %p47 = por %p45, %p46
      %s49 = sadd.s32 %s48, 1
      %p52 = scmp.eq.s32.totalorder %s14, 1
      %p53 = scmp.ne.s32.totalorder %s48, %s50
      %p54 = scmp.eq.s32.totalorder %s14, 0
      %p55 = por %p53, %p54
      %p56 = scmp.ne.s32.totalorder %s48, %s50
      %p57 = scmp.eq.s32.totalorder %s19, 1
      %p58 = por %p56, %p57
      %p59 = scmp.ne.s32.totalorder %s50, %s51
      %p60 = scmp.eq.s32.totalorder %s19, 0
      %p61 = por %p59, %p60
      %p62 = scmp.ne.s32.totalorder %s50, %s51
      %p63 = scmp.eq.s32.totalorder %s20, 1
      %p64 = por %p62, %p63
      %p66 = scmp.ne.s32.totalorder %s51, %s65
      %p67 = scmp.eq.s32.totalorder %s20, 0
      %p68 = por %p66, %p67
      %s70 = sadd.s32 %s69, 1
      %p73 = scmp.eq.s32.totalorder %s14, 1
      %p74 = scmp.ne.s32.totalorder %s69, %s71
      %p75 = scmp.eq.s32.totalorder %s14, 0
      %p76 = por %p74, %p75
      %p77 = scmp.ne.s32.totalorder %s69, %s71
      %p78 = scmp.eq.s32.totalorder %s19, 1
      %p79 = por %p77, %p78
      %p80 = scmp.ne.s32.totalorder %s71, %s72
      %p81 = scmp.eq.s32.totalorder %s19, 0
      %p82 = por %p80, %p81
      %p83 = scmp.ne.s32.totalorder %s71, %s72
      %p84 = scmp.eq.s32.totalorder %s20, 1
      %p85 = por %p83, %p84
      %p87 = scmp.ne.s32.totalorder %s72, %s86
      %p88 = scmp.eq.s32.totalorder %s20, 0
      %p89 = por %p87, %p88
      %s91 = sadd.s32 %s90, 1
      %p94 = scmp.eq.s32.totalorder %s14, 1
      %p95 = scmp.ne.s32.totalorder %s90, %s92
      %p96 = scmp.eq.s32.totalorder %s14, 0
      %p97 = por %p95, %p96
      %p98 = scmp.ne.s32.totalorder %s90, %s92
      %p99 = scmp.eq.s32.totalorder %s19, 1
      %p100 = por %p98, %p99
      %p101 = scmp.ne.s32.totalorder %s92, %s93
      %p102 = scmp.eq.s32.totalorder %s19, 0
      %p103 = por %p101, %p102
      %p104 = scmp.ne.s32.totalorder %s92, %s93
      %p105 = scmp.eq.s32.totalorder %s20, 1
      %p106 = por %p104, %p105
      %p108 = scmp.ne.s32.totalorder %s93, %s107
      %p109 = scmp.eq.s32.totalorder %s20, 0
      %p110 = por %p108, %p109
      %s112 = sadd.s32 %s111, 1
      %p115 = scmp.eq.s32.totalorder %s14, 1
      %p116 = scmp.ne.s32.totalorder %s111, %s113
      %p117 = scmp.eq.s32.totalorder %s14, 0
      %p118 = por %p116, %p117
      %p119 = scmp.ne.s32.totalorder %s111, %s113
      %p120 = scmp.eq.s32.totalorder %s19, 1
      %p121 = por %p119, %p120
      %p122 = scmp.ne.s32.totalorder %s113, %s114
      %p123 = scmp.eq.s32.totalorder %s19, 0
      %p124 = por %p122, %p123
      %p125 = scmp.ne.s32.totalorder %s113, %s114
      %p126 = scmp.eq.s32.totalorder %s20, 1
      %p127 = por %p125, %p126
      %p129 = scmp.ne.s32.totalorder %s114, %s128
      %p130 = scmp.eq.s32.totalorder %s20, 0
      %p131 = por %p129, %p130
      %s132 = ssub.s32 %s14, %s21
      %p133 = scmp.eq.s32.totalorder %s132, 0
      %s135 = sadd.s32 %s134, 1
      %s136 = scalar_select %p133, %s134, %s135
      %p139 = pneg %p133
      %p140 = scmp.eq.s32.totalorder %s14, 1
      %p141 = por %p139, %p140
      %p142 = scmp.ne.s32.totalorder %s134, %s137
      %p143 = scmp.eq.s32.totalorder %s14, 0
      %p144 = por %p142, %p143
      %p145 = scmp.ne.s32.totalorder %s134, %s137
      %p146 = scmp.eq.s32.totalorder %s19, 1
      %p147 = por %p145, %p146
      %p148 = scmp.ne.s32.totalorder %s137, %s138
      %p149 = scmp.eq.s32.totalorder %s19, 0
      %p150 = por %p148, %p149
      %p151 = scmp.ne.s32.totalorder %s137, %s138
      %p152 = scmp.eq.s32.totalorder %s20, 1
      %p153 = por %p151, %p152
      %p155 = scmp.ne.s32.totalorder %s138, %s154
      %p156 = scmp.eq.s32.totalorder %s20, 0
      %p157 = por %p155, %p156
      %p158 = scmp.le.s32.totalorder 1, %s14
      %p159 = scmp.lt.s32.totalorder %s14, 3
      %p160 = pnand %p158, %p159
      %p161 = pneg %p160
      // Predicated region
      $region9: #{tpu_custom_call.1} parent=5 // pred_check
        _
      $region10: #{tpu_custom_call.1} parent=5 // pred_check_branch
        %163 = sbr.rel (%p160) target = $region12
      $region11: #{tpu_custom_call.1} parent=5 // pred_region
        %s164 = ssub.s32 %s14, 1
        // Predicated region
        $region13: #{tpu_custom_call.1} parent=11 // pred_check
          %p165 = pneg %p61
        $region14: #{tpu_custom_call.1} parent=11 // pred_check_branch
          %167 = sbr.rel (%p165) target = $region16
        $region15: #{tpu_custom_call.1} parent=11 // pred_region
          _
        $region16: #{tpu_custom_call.1} parent=11 // pred_fallthru
          _
        // Predicated region
        $region17: #{tpu_custom_call.1} parent=11 // pred_check
          %p168 = pneg %p82
        $region18: #{tpu_custom_call.1} parent=11 // pred_check_branch
          %170 = sbr.rel (%p168) target = $region20
        $region19: #{tpu_custom_call.1} parent=11 // pred_region
          _
        $region20: #{tpu_custom_call.1} parent=11 // pred_fallthru
          _
        // Predicated region
        $region21: #{tpu_custom_call.1} parent=11 // pred_check
          %p171 = pneg %p103
        $region22: #{tpu_custom_call.1} parent=11 // pred_check_branch
          %173 = sbr.rel (%p171) target = $region24
        $region23: #{tpu_custom_call.1} parent=11 // pred_region
          _
        $region24: #{tpu_custom_call.1} parent=11 // pred_fallthru
          _
        // Predicated region
        $region25: #{tpu_custom_call.1} parent=11 // pred_check
          %p174 = pneg %p124
        $region26: #{tpu_custom_call.1} parent=11 // pred_check_branch
          %176 = sbr.rel (%p174) target = $region28
        $region27: #{tpu_custom_call.1} parent=11 // pred_region
          _
        $region28: #{tpu_custom_call.1} parent=11 // pred_fallthru
          _
      $region12: #{tpu_custom_call.1} parent=5 // pred_fallthru
        _
      %p177 = scmp.lt.s32.totalorder %s14, 2
      // Predicated region
      $region29: #{tpu_custom_call.1} parent=5 // pred_check
        %p178 = pneg %p177
      $region30: #{tpu_custom_call.1} parent=5 // pred_check_branch
        %180 = sbr.rel (%p178) target = $region32
      $region31: #{tpu_custom_call.1} parent=5 // pred_region
        // Predicated region
        $region33: #{tpu_custom_call.1} parent=31 // pred_check
          %p181 = pneg %p34
        $region34: #{tpu_custom_call.1} parent=31 // pred_check_branch
          %183 = sbr.rel (%p181) target = $region36
        $region35: #{tpu_custom_call.1} parent=31 // pred_region
          %p184 = scmp.lt.s32.totalorder %s14, 1
          %s185 = scalar_select %p184, %s14, 1
          %s186 = smul.addr %s185, 2
          %s187 = smul.addr %s186, 4
          %s188 = scalar_lea.vmem %s0, %s187
        $region36: #{tpu_custom_call.1} parent=31 // pred_fallthru
          _
      $region32: #{tpu_custom_call.1} parent=5 // pred_fallthru
        _
      %p189 = scmp.le.s32.totalorder 1, %s14
      %p190 = scmp.lt.s32.totalorder %s14, 3
      %p191 = pnand %p189, %p190
      %p192 = pneg %p191
      // Predicated region
      $region37: #{tpu_custom_call.1} parent=5 // pred_check
        _
      $region38: #{tpu_custom_call.1} parent=5 // pred_check_branch
        %194 = sbr.rel (%p191) target = $region40
      $region39: #{tpu_custom_call.1} parent=5 // pred_region
        %s195 = ssub.s32 %s14, 1
        %p196 = scmp.lt.s32.totalorder %s19, 1
        %s197 = scalar_select %p196, %s19, 1
        %s198 = smul.addr %s197, 2
        %s199 = smul.addr %s198, 4
        %s200 = scalar_lea.vmem %s0, %s199
        %p201 = pneg %p40
        %p202 = pneg %p37
        %p203 = pneg %p61
        %p204 = pneg %p58
        %p205 = pneg %p82
        %p206 = pneg %p79
        %p207 = pneg %p103
        %p208 = pneg %p100
        %p209 = pneg %p124
        %p210 = pneg %p121
        %p211 = pneg %p150
        %p212 = pneg %p147
        %s213 = sand.u32 %s137, 1
        %s214 = scalar_lea.sflag [#allocation3], %s213
        %s215 = sand.u32 %s137, 1
        %s216 = smul.addr %s215, 16
        %s217 = scalar_lea.vmem [#allocation2], %s216
        %p218 = scmp.lt.s32.totalorder %s19, 1
        %s219 = scalar_select %p218, %s19, 1
        %s220 = smul.addr %s219, 2
        %s221 = smul.addr %s220, 4
        %s222 = scalar_lea.vmem %s0, %s221
        %v223 = vld [vmem:[%s2] sm:$0xff]
        %v224 = vld [vmem:[%s2 + $0x8] sm:$0xff]
        %v225 = vld [vmem:[%s2 + $0x10] sm:$0x1]
        %v226 = vld [vmem:[%s2 + $0x18] sm:$0x1]
        %v227 = vld [vmem:[%s1] sm:$0xff]
        %s228 = scalar_lea.vmem %s1, 8
        %v229 = vld [vmem:[%s228] sm:$0xff]
        %s230 = scalar_lea.vmem %s1, 16
        %v231 = vld [vmem:[%s230] sm:$0xff]
        %s232 = scalar_lea.vmem %s1, 24
        %v233 = vld [vmem:[%s232] sm:$0xff]
        %s234 = scalar_lea.vmem %s1, 32
        %v235 = vld [vmem:[%s234] sm:$0xff]
        %s236 = scalar_lea.vmem %s1, 40
        %v237 = vld [vmem:[%s236] sm:$0xff]
        %s238 = scalar_lea.vmem %s1, 48
        %v239 = vld [vmem:[%s238] sm:$0xff]
        %s240 = scalar_lea.vmem %s1, 56
        %v241 = vld [vmem:[%s240] sm:$0xff]
        %s242 = scalar_lea.vmem %s1, 64
        %v243 = vld [vmem:[%s242] sm:$0xff]
        %v244 = vld [vmem:[%s3] sm:$0xff]
        %v245 = vsub.f32 1.0, %v223
        %v246 = vsub.f32 1.0, %v224
        %v247 = vsub.f32 1.0, %v225
        %v248 = vsub.f32 1.0, %v226
        %v249 = vld [vmem:[%s4] sm:$0xff]
        %251 = vset.pattern.permute.xlu0 0
        %252 = vperm.xlu0 %251, %v249
        %v253 = vpop.permute.xlu0 %252
        %vm255 = vcmask 72704
        %v257 = vsel %vm255, %v244, 0
        %vm259 = vcmask 1040384
        %v261 = vsel %vm259, %v247, 0
        %v264 = vsel %vm259, %v248, 0
        %266 = vmatprep.subr.mxu0 %v246
        %267 = vmatpush1.msra.mxu0 %v245
        %268 = vmatprep.subr.mxu0 %v264
        %269 = vmatpush1.msra.mxu0 %v261
        %270 = vmatprep.subr.mxu0 0.0
        %271 = vmatpush1.msra.mxu0 0.0
        %272 = vmatprep.subr.mxu0 0.0
        %273 = vmatpush1.msra.mxu0 0.0
        %274 = vmatprep.subr.mxu0 0.0
        %275 = vmatpush1.msra.mxu0 0.0
        %276 = vmatprep.subr.mxu0 0.0
        %277 = vmatpush1.msra.mxu0 0.0
        %278 = vmatprep.subr.mxu0 0.0
        %279 = vmatpush1.msra.mxu0 0.0
        %280 = vmatprep.subr.mxu0 0.0
        %281 = vmatpush1.msra.mxu0 0.0
        %282 = vmatprep.subr.mxu0 0.0
        %283 = vmatpush1.msra.mxu0 0.0
        %284 = vmatprep.subr.mxu0 0.0
        %285 = vmatpush1.msra.mxu0 0.0
        %286 = vmatprep.subr.mxu0 0.0
        %287 = vmatpush1.msra.mxu0 0.0
        %288 = vmatprep.subr.mxu0 0.0
        %289 = vmatpush1.msra.mxu0 0.0
        %290 = vmatprep.subr.mxu0 0.0
        %291 = vmatpush1.msra.mxu0 0.0
        %292 = vmatprep.subr.mxu0 0.0
        %293 = vmatpush1.msra.mxu0 0.0
        %294 = vmatprep.subr.mxu0 0.0
        %295 = vmatpush1.msra.mxu0 0.0
        %296 = vmatprep.subr.mxu0 0.0
        %297 = vmatpush1.msra.mxu0 0.0
        %298 = vmatprep.subr.mxu0 0.0
        %299 = vmatpush1.msra.mxu0 0.0
        %300 = vmatprep.subr.mxu0 0.0
        %301 = vmatpush1.msra.mxu0 0.0
        %302 = vmatprep.subr.mxu0 0.0
        %303 = vmatpush1.msra.mxu0 0.0
        %304 = vmatprep.subr.mxu0 0.0
        %305 = vmatpush1.msra.mxu0 0.0
        %306 = vmatprep.subr.mxu0 0.0
        %307 = vmatpush1.msra.mxu0 0.0
        %308 = vmatprep.subr.mxu0 0.0
        %309 = vmatpush1.msra.mxu0 0.0
        %310 = vmatprep.subr.mxu0 0.0
        %311 = vmatpush1.msra.mxu0 0.0
        %312 = vmatprep.subr.mxu0 0.0
        %313 = vmatpush1.msra.mxu0 0.0
        %314 = vmatprep.subr.mxu0 0.0
        %315 = vmatpush1.msra.mxu0 0.0
        %316 = vmatprep.subr.mxu0 0.0
        %317 = vmatpush1.msra.mxu0 0.0
        %318 = vmatprep.subr.mxu0 0.0
        %319 = vmatpush1.msra.mxu0 0.0
        %320 = vmatprep.subr.mxu0 0.0
        %321 = vmatpush1.msra.mxu0 0.0
        %322 = vmatprep.subr.mxu0 0.0
        %323 = vmatpush1.msra.mxu0 0.0
        %324 = vmatprep.subr.mxu0 0.0
        %325 = vmatpush1.msra.mxu0 0.0
        %326 = vmatprep.subr.mxu0 0.0
        %327 = vmatpush1.msra.mxu0 0.0
        %328 = vmatprep.subr.mxu0 0.0
        %329 = vmatpush1.msra.mxu0 0.0
        %330 = vmatprep.mubr.f32.mxu0 0.0
        %331 = vmatmul.mubr.f32.gmra.mrb[0].mxu0 %v257
        %v332 = vpop.f32.mrb[0].mxu0
        %v333 = vadd.f32 %v253, %v332
        %v334 = vpop.f32.mrb[0].mxu0
        %v335 = vadd.f32 %v253, %v334
        %336 = vdwg.mxu0
        %v337 = vld [vmem:[%s222] sm:$0xff]
        %v339 = vcombine.high %v337, %v337
        %341 = vrot.lane.b32.xlu0 %v337, 17
        %v342 = vpop.permute.xlu0 %341
        %343 = vrot.lane.b32.xlu0 %v339, 17
        %v344 = vpop.permute.xlu0 %343
        %v345 = vlaneseq
        %v346 = vand.u32 %v345, 127
        %vm347 = vcmp.lt.s32.totalorder %v346, 17
        %v348 = vsel %vm347, %v342, %v344
        %v349 = vsel %vm347, %v344, %v342
        %v350 = vlaneseq
        %v351 = vshrl.u32 %v350, 7
        %v352 = vsub.s32 0, %v351
        %v353 = vrot.slane %v223, %v352
        %v354 = vlaneseq
        %v355 = vshrl.u32 %v354, 7
        %v356 = vsub.s32 0, %v355
        %v357 = vrot.slane %v224, %v356
        %v358 = vmul.f32 %v349, %v353
        %v359 = vmul.f32 %v348, %v357
        %vm360 = vcmask 31744
        %v362 = vsel %vm360, %v227, 0
        %vm364 = vcmask 1043456
        %v366 = vsel %vm364, %v358, 0
        %v369 = vsel %vm364, %v359, 0
        %371 = vmatprep.subr.mxu0 %v369
        %372 = vmatpush1.msra.mxu0 %v366
        %373 = vmatprep.subr.mxu0 0.0
        %374 = vmatpush1.msra.mxu0 0.0
        %375 = vmatprep.subr.mxu0 0.0
        %376 = vmatpush1.msra.mxu0 0.0
        %377 = vmatprep.subr.mxu0 0.0
        %378 = vmatpush1.msra.mxu0 0.0
        %379 = vmatprep.subr.mxu0 0.0
        %380 = vmatpush1.msra.mxu0 0.0
        %381 = vmatprep.subr.mxu0 0.0
        %382 = vmatpush1.msra.mxu0 0.0
        %383 = vmatprep.subr.mxu0 0.0
        %384 = vmatpush1.msra.mxu0 0.0
        %385 = vmatprep.subr.mxu0 0.0
        %386 = vmatpush1.msra.mxu0 0.0
        %387 = vmatprep.subr.mxu0 0.0
        %388 = vmatpush1.msra.mxu0 0.0
        %389 = vmatprep.subr.mxu0 0.0
        %390 = vmatpush1.msra.mxu0 0.0
        %391 = vmatprep.subr.mxu0 0.0
        %392 = vmatpush1.msra.mxu0 0.0
        %393 = vmatprep.subr.mxu0 0.0
        %394 = vmatpush1.msra.mxu0 0.0
        %395 = vmatprep.subr.mxu0 0.0
        %396 = vmatpush1.msra.mxu0 0.0
        %397 = vmatprep.subr.mxu0 0.0
        %398 = vmatpush1.msra.mxu0 0.0
        %399 = vmatprep.subr.mxu0 0.0
        %400 = vmatpush1.msra.mxu0 0.0
        %401 = vmatprep.subr.mxu0 0.0
        %402 = vmatpush1.msra.mxu0 0.0
        %403 = vmatprep.subr.mxu0 0.0
        %404 = vmatpush1.msra.mxu0 0.0
        %405 = vmatprep.subr.mxu0 0.0
        %406 = vmatpush1.msra.mxu0 0.0
        %407 = vmatprep.subr.mxu0 0.0
        %408 = vmatpush1.msra.mxu0 0.0
        %409 = vmatprep.subr.mxu0 0.0
        %410 = vmatpush1.msra.mxu0 0.0
        %411 = vmatprep.subr.mxu0 0.0
        %412 = vmatpush1.msra.mxu0 0.0
        %413 = vmatprep.subr.mxu0 0.0
        %414 = vmatpush1.msra.mxu0 0.0
        %415 = vmatprep.subr.mxu0 0.0
        %416 = vmatpush1.msra.mxu0 0.0
        %417 = vmatprep.subr.mxu0 0.0
        %418 = vmatpush1.msra.mxu0 0.0
        %419 = vmatprep.subr.mxu0 0.0
        %420 = vmatpush1.msra.mxu0 0.0
        %421 = vmatprep.subr.mxu0 0.0
        %422 = vmatpush1.msra.mxu0 0.0
        %423 = vmatprep.subr.mxu0 0.0
        %424 = vmatpush1.msra.mxu0 0.0
        %425 = vmatprep.subr.mxu0 0.0
        %426 = vmatpush1.msra.mxu0 0.0
        %427 = vmatprep.subr.mxu0 0.0
        %428 = vmatpush1.msra.mxu0 0.0
        %429 = vmatprep.subr.mxu0 0.0
        %430 = vmatpush1.msra.mxu0 0.0
        %431 = vmatprep.subr.mxu0 0.0
        %432 = vmatpush1.msra.mxu0 0.0
        %433 = vmatprep.subr.mxu0 0.0
        %434 = vmatpush1.msra.mxu0 0.0
        %435 = vmatprep.mubr.f32.mxu0 0.0
        %436 = vmatmul.mubr.f32.gmra.mrb[0].mxu0 %v362
        %v437 = vpop.f32.mrb[0].mxu0
        %v438 = vadd.f32 0.0, %v437
        %v439 = vpop.f32.mrb[0].mxu0
        %v440 = vadd.f32 0.0, %v439
        %441 = vdwg.mxu0
        %v442 = vadd.f32 %v333, %v438
        %v443 = vadd.f32 %v335, %v440
        %444 = vrot.lane.b32.xlu0 %v337, 16
        %v445 = vpop.permute.xlu0 %444
        %446 = vrot.lane.b32.xlu0 %v339, 16
        %v447 = vpop.permute.xlu0 %446
        %vm448 = vcmp.lt.s32.totalorder %v346, 16
        %v449 = vsel %vm448, %v445, %v447
        %v450 = vsel %vm448, %v447, %v445
        %v451 = vlaneseq
        %v452 = vshrl.u32 %v451, 7
        %v453 = vsub.s32 1, %v452
        %v454 = vrot.slane %v223, %v453
        %v455 = vlaneseq
        %v456 = vshrl.u32 %v455, 7
        %v457 = vsub.s32 1, %v456
        %v458 = vrot.slane %v224, %v457
        %v459 = vmul.f32 %v450, %v454
        %v460 = vmul.f32 %v449, %v458
        %v462 = vsel %vm360, %v229, 0
        %v465 = vsel %vm364, %v459, 0
        %v468 = vsel %vm364, %v460, 0
        %470 = vmatprep.subr.mxu0 %v468
        %471 = vmatpush1.msra.mxu0 %v465
        %472 = vmatprep.subr.mxu0 0.0
        %473 = vmatpush1.msra.mxu0 0.0
        %474 = vmatprep.subr.mxu0 0.0
        %475 = vmatpush1.msra.mxu0 0.0
        %476 = vmatprep.subr.mxu0 0.0
        %477 = vmatpush1.msra.mxu0 0.0
        %478 = vmatprep.subr.mxu0 0.0
        %479 = vmatpush1.msra.mxu0 0.0
        %480 = vmatprep.subr.mxu0 0.0
        %481 = vmatpush1.msra.mxu0 0.0
        %482 = vmatprep.subr.mxu0 0.0
        %483 = vmatpush1.msra.mxu0 0.0
        %484 = vmatprep.subr.mxu0 0.0
        %485 = vmatpush1.msra.mxu0 0.0
        %486 = vmatprep.subr.mxu0 0.0
        %487 = vmatpush1.msra.mxu0 0.0
        %488 = vmatprep.subr.mxu0 0.0
        %489 = vmatpush1.msra.mxu0 0.0
        %490 = vmatprep.subr.mxu0 0.0
        %491 = vmatpush1.msra.mxu0 0.0
        %492 = vmatprep.subr.mxu0 0.0
        %493 = vmatpush1.msra.mxu0 0.0
        %494 = vmatprep.subr.mxu0 0.0
        %495 = vmatpush1.msra.mxu0 0.0
        %496 = vmatprep.subr.mxu0 0.0
        %497 = vmatpush1.msra.mxu0 0.0
        %498 = vmatprep.subr.mxu0 0.0
        %499 = vmatpush1.msra.mxu0 0.0
        %500 = vmatprep.subr.mxu0 0.0
        %501 = vmatpush1.msra.mxu0 0.0
        %502 = vmatprep.subr.mxu0 0.0
        %503 = vmatpush1.msra.mxu0 0.0
        %504 = vmatprep.subr.mxu0 0.0
        %505 = vmatpush1.msra.mxu0 0.0
        %506 = vmatprep.subr.mxu0 0.0
        %507 = vmatpush1.msra.mxu0 0.0
        %508 = vmatprep.subr.mxu0 0.0
        %509 = vmatpush1.msra.mxu0 0.0
        %510 = vmatprep.subr.mxu0 0.0
        %511 = vmatpush1.msra.mxu0 0.0
        %512 = vmatprep.subr.mxu0 0.0
        %513 = vmatpush1.msra.mxu0 0.0
        %514 = vmatprep.subr.mxu0 0.0
        %515 = vmatpush1.msra.mxu0 0.0
        %516 = vmatprep.subr.mxu0 0.0
        %517 = vmatpush1.msra.mxu0 0.0
        %518 = vmatprep.subr.mxu0 0.0
        %519 = vmatpush1.msra.mxu0 0.0
        %520 = vmatprep.subr.mxu0 0.0
        %521 = vmatpush1.msra.mxu0 0.0
        %522 = vmatprep.subr.mxu0 0.0
        %523 = vmatpush1.msra.mxu0 0.0
        %524 = vmatprep.subr.mxu0 0.0
        %525 = vmatpush1.msra.mxu0 0.0
        %526 = vmatprep.subr.mxu0 0.0
        %527 = vmatpush1.msra.mxu0 0.0
        %528 = vmatprep.subr.mxu0 0.0
        %529 = vmatpush1.msra.mxu0 0.0
        %530 = vmatprep.subr.mxu0 0.0
        %531 = vmatpush1.msra.mxu0 0.0
        %532 = vmatprep.subr.mxu0 0.0
        %533 = vmatpush1.msra.mxu0 0.0
        %534 = vmatprep.mubr.f32.mxu0 0.0
        %535 = vmatmul.mubr.f32.gmra.mrb[0].mxu0 %v462
        %v536 = vpop.f32.mrb[0].mxu0
        %v537 = vadd.f32 0.0, %v536
        %v538 = vpop.f32.mrb[0].mxu0
        %v539 = vadd.f32 0.0, %v538
        %540 = vdwg.mxu0
        %v541 = vadd.f32 %v442, %v537
        %v542 = vadd.f32 %v443, %v539
        %543 = vrot.lane.b32.xlu0 %v337, 15
        %v544 = vpop.permute.xlu0 %543
        %545 = vrot.lane.b32.xlu0 %v339, 15
        %v546 = vpop.permute.xlu0 %545
        %vm547 = vcmp.lt.s32.totalorder %v346, 15
        %v548 = vsel %vm547, %v544, %v546
        %v549 = vsel %vm547, %v546, %v544
        %v550 = vlaneseq
        %v551 = vshrl.u32 %v550, 7
        %v552 = vsub.s32 2, %v551
        %v553 = vrot.slane %v223, %v552
        %v554 = vlaneseq
        %v555 = vshrl.u32 %v554, 7
        %v556 = vsub.s32 2, %v555
        %v557 = vrot.slane %v224, %v556
        %v558 = vmul.f32 %v549, %v553
        %v559 = vmul.f32 %v548, %v557
        %v561 = vsel %vm360, %v231, 0
        %v564 = vsel %vm364, %v558, 0
        %v567 = vsel %vm364, %v559, 0
        %569 = vmatprep.subr.mxu0 %v567
        %570 = vmatpush1.msra.mxu0 %v564
        %571 = vmatprep.subr.mxu0 0.0
        %572 = vmatpush1.msra.mxu0 0.0
        %573 = vmatprep.subr.mxu0 0.0
        %574 = vmatpush1.msra.mxu0 0.0
        %575 = vmatprep.subr.mxu0 0.0
        %576 = vmatpush1.msra.mxu0 0.0
        %577 = vmatprep.subr.mxu0 0.0
        %578 = vmatpush1.msra.mxu0 0.0
        %579 = vmatprep.subr.mxu0 0.0
        %580 = vmatpush1.msra.mxu0 0.0
        %581 = vmatprep.subr.mxu0 0.0
        %582 = vmatpush1.msra.mxu0 0.0
        %583 = vmatprep.subr.mxu0 0.0
        %584 = vmatpush1.msra.mxu0 0.0
        %585 = vmatprep.subr.mxu0 0.0
        %586 = vmatpush1.msra.mxu0 0.0
        %587 = vmatprep.subr.mxu0 0.0
        %588 = vmatpush1.msra.mxu0 0.0
        %589 = vmatprep.subr.mxu0 0.0
        %590 = vmatpush1.msra.mxu0 0.0
        %591 = vmatprep.subr.mxu0 0.0
        %592 = vmatpush1.msra.mxu0 0.0
        %593 = vmatprep.subr.mxu0 0.0
        %594 = vmatpush1.msra.mxu0 0.0
        %595 = vmatprep.subr.mxu0 0.0
        %596 = vmatpush1.msra.mxu0 0.0
        %597 = vmatprep.subr.mxu0 0.0
        %598 = vmatpush1.msra.mxu0 0.0
        %599 = vmatprep.subr.mxu0 0.0
        %600 = vmatpush1.msra.mxu0 0.0
        %601 = vmatprep.subr.mxu0 0.0
        %602 = vmatpush1.msra.mxu0 0.0
        %603 = vmatprep.subr.mxu0 0.0
        %604 = vmatpush1.msra.mxu0 0.0
        %605 = vmatprep.subr.mxu0 0.0
        %606 = vmatpush1.msra.mxu0 0.0
        %607 = vmatprep.subr.mxu0 0.0
        %608 = vmatpush1.msra.mxu0 0.0
        %609 = vmatprep.subr.mxu0 0.0
        %610 = vmatpush1.msra.mxu0 0.0
        %611 = vmatprep.subr.mxu0 0.0
        %612 = vmatpush1.msra.mxu0 0.0
        %613 = vmatprep.subr.mxu0 0.0
        %614 = vmatpush1.msra.mxu0 0.0
        %615 = vmatprep.subr.mxu0 0.0
        %616 = vmatpush1.msra.mxu0 0.0
        %617 = vmatprep.subr.mxu0 0.0
        %618 = vmatpush1.msra.mxu0 0.0
        %619 = vmatprep.subr.mxu0 0.0
        %620 = vmatpush1.msra.mxu0 0.0
        %621 = vmatprep.subr.mxu0 0.0
        %622 = vmatpush1.msra.mxu0 0.0
        %623 = vmatprep.subr.mxu0 0.0
        %624 = vmatpush1.msra.mxu0 0.0
        %625 = vmatprep.subr.mxu0 0.0
        %626 = vmatpush1.msra.mxu0 0.0
        %627 = vmatprep.subr.mxu0 0.0
        %628 = vmatpush1.msra.mxu0 0.0
        %629 = vmatprep.subr.mxu0 0.0
        %630 = vmatpush1.msra.mxu0 0.0
        %631 = vmatprep.subr.mxu0 0.0
        %632 = vmatpush1.msra.mxu0 0.0
        %633 = vmatprep.mubr.f32.mxu0 0.0
        %634 = vmatmul.mubr.f32.gmra.mrb[0].mxu0 %v561
        %v635 = vpop.f32.mrb[0].mxu0
        %v636 = vadd.f32 0.0, %v635
        %v637 = vpop.f32.mrb[0].mxu0
        %v638 = vadd.f32 0.0, %v637
        %639 = vdwg.mxu0
        %v640 = vadd.f32 %v541, %v636
        %v641 = vadd.f32 %v542, %v638
        %642 = vrot.lane.b32.xlu0 %v337, 1
        %v643 = vpop.permute.xlu0 %642
        %644 = vrot.lane.b32.xlu0 %v339, 1
        %v645 = vpop.permute.xlu0 %644
        %vm646 = vcmp.lt.s32.totalorder %v346, 1
        %v647 = vsel %vm646, %v643, %v645
        %v648 = vsel %vm646, %v645, %v643
        %v649 = vlaneseq
        %v650 = vshrl.u32 %v649, 7
        %v651 = vsub.s32 3, %v650
        %v652 = vrot.slane %v223, %v651
        %v653 = vlaneseq
        %v654 = vshrl.u32 %v653, 7
        %v655 = vsub.s32 3, %v654
        %v656 = vrot.slane %v224, %v655
        %v657 = vmul.f32 %v648, %v652
        %v658 = vmul.f32 %v647, %v656
        %v660 = vsel %vm360, %v233, 0
        %v663 = vsel %vm364, %v657, 0
        %v666 = vsel %vm364, %v658, 0
        %668 = vmatprep.subr.mxu0 %v666
        %669 = vmatpush1.msra.mxu0 %v663
        %670 = vmatprep.subr.mxu0 0.0
        %671 = vmatpush1.msra.mxu0 0.0
        %672 = vmatprep.subr.mxu0 0.0
        %673 = vmatpush1.msra.mxu0 0.0
        %674 = vmatprep.subr.mxu0 0.0
        %675 = vmatpush1.msra.mxu0 0.0
        %676 = vmatprep.subr.mxu0 0.0
        %677 = vmatpush1.msra.mxu0 0.0
        %678 = vmatprep.subr.mxu0 0.0
        %679 = vmatpush1.msra.mxu0 0.0
        %680 = vmatprep.subr.mxu0 0.0
        %681 = vmatpush1.msra.mxu0 0.0
        %682 = vmatprep.subr.mxu0 0.0
        %683 = vmatpush1.msra.mxu0 0.0
        %684 = vmatprep.subr.mxu0 0.0
        %685 = vmatpush1.msra.mxu0 0.0
        %686 = vmatprep.subr.mxu0 0.0
        %687 = vmatpush1.msra.mxu0 0.0
        %688 = vmatprep.subr.mxu0 0.0
        %689 = vmatpush1.msra.mxu0 0.0
        %690 = vmatprep.subr.mxu0 0.0
        %691 = vmatpush1.msra.mxu0 0.0
        %692 = vmatprep.subr.mxu0 0.0
        %693 = vmatpush1.msra.mxu0 0.0
        %694 = vmatprep.subr.mxu0 0.0
        %695 = vmatpush1.msra.mxu0 0.0
        %696 = vmatprep.subr.mxu0 0.0
        %697 = vmatpush1.msra.mxu0 0.0
        %698 = vmatprep.subr.mxu0 0.0
        %699 = vmatpush1.msra.mxu0 0.0
        %700 = vmatprep.subr.mxu0 0.0
        %701 = vmatpush1.msra.mxu0 0.0
        %702 = vmatprep.subr.mxu0 0.0
        %703 = vmatpush1.msra.mxu0 0.0
        %704 = vmatprep.subr.mxu0 0.0
        %705 = vmatpush1.msra.mxu0 0.0
        %706 = vmatprep.subr.mxu0 0.0
        %707 = vmatpush1.msra.mxu0 0.0
        %708 = vmatprep.subr.mxu0 0.0
        %709 = vmatpush1.msra.mxu0 0.0
        %710 = vmatprep.subr.mxu0 0.0
        %711 = vmatpush1.msra.mxu0 0.0
        %712 = vmatprep.subr.mxu0 0.0
        %713 = vmatpush1.msra.mxu0 0.0
        %714 = vmatprep.subr.mxu0 0.0
        %715 = vmatpush1.msra.mxu0 0.0
        %716 = vmatprep.subr.mxu0 0.0
        %717 = vmatpush1.msra.mxu0 0.0
        %718 = vmatprep.subr.mxu0 0.0
        %719 = vmatpush1.msra.mxu0 0.0
        %720 = vmatprep.subr.mxu0 0.0
        %721 = vmatpush1.msra.mxu0 0.0
        %722 = vmatprep.subr.mxu0 0.0
        %723 = vmatpush1.msra.mxu0 0.0
        %724 = vmatprep.subr.mxu0 0.0
        %725 = vmatpush1.msra.mxu0 0.0
        %726 = vmatprep.subr.mxu0 0.0
        %727 = vmatpush1.msra.mxu0 0.0
        %728 = vmatprep.subr.mxu0 0.0
        %729 = vmatpush1.msra.mxu0 0.0
        %730 = vmatprep.subr.mxu0 0.0
        %731 = vmatpush1.msra.mxu0 0.0
        %732 = vmatprep.mubr.f32.mxu0 0.0
        %733 = vmatmul.mubr.f32.gmra.mrb[0].mxu0 %v660
        %v734 = vpop.f32.mrb[0].mxu0
        %v735 = vadd.f32 0.0, %v734
        %v736 = vpop.f32.mrb[0].mxu0
        %v737 = vadd.f32 0.0, %v736
        %738 = vdwg.mxu0
        %v739 = vadd.f32 %v640, %v735
        %v740 = vadd.f32 %v641, %v737
        %v742 = vsel %vm360, %v235, 0
        %v744 = vsel %vm364, %v337, 0
        %v746 = vsel %vm364, %v339, 0
        %748 = vmatprep.subr.mxu0 %v746
        %749 = vmatpush1.msra.mxu0 %v744
        %750 = vmatprep.subr.mxu0 0.0
        %751 = vmatpush1.msra.mxu0 0.0
        %752 = vmatprep.subr.mxu0 0.0
        %753 = vmatpush1.msra.mxu0 0.0
        %754 = vmatprep.subr.mxu0 0.0
        %755 = vmatpush1.msra.mxu0 0.0
        %756 = vmatprep.subr.mxu0 0.0
        %757 = vmatpush1.msra.mxu0 0.0
        %758 = vmatprep.subr.mxu0 0.0
        %759 = vmatpush1.msra.mxu0 0.0
        %760 = vmatprep.subr.mxu0 0.0
        %761 = vmatpush1.msra.mxu0 0.0
        %762 = vmatprep.subr.mxu0 0.0
        %763 = vmatpush1.msra.mxu0 0.0
        %764 = vmatprep.subr.mxu0 0.0
        %765 = vmatpush1.msra.mxu0 0.0
        %766 = vmatprep.subr.mxu0 0.0
        %767 = vmatpush1.msra.mxu0 0.0
        %768 = vmatprep.subr.mxu0 0.0
        %769 = vmatpush1.msra.mxu0 0.0
        %770 = vmatprep.subr.mxu0 0.0
        %771 = vmatpush1.msra.mxu0 0.0
        %772 = vmatprep.subr.mxu0 0.0
        %773 = vmatpush1.msra.mxu0 0.0
        %774 = vmatprep.subr.mxu0 0.0
        %775 = vmatpush1.msra.mxu0 0.0
        %776 = vmatprep.subr.mxu0 0.0
        %777 = vmatpush1.msra.mxu0 0.0
        %778 = vmatprep.subr.mxu0 0.0
        %779 = vmatpush1.msra.mxu0 0.0
        %780 = vmatprep.subr.mxu0 0.0
        %781 = vmatpush1.msra.mxu0 0.0
        %782 = vmatprep.subr.mxu0 0.0
        %783 = vmatpush1.msra.mxu0 0.0
        %784 = vmatprep.subr.mxu0 0.0
        %785 = vmatpush1.msra.mxu0 0.0
        %786 = vmatprep.subr.mxu0 0.0
        %787 = vmatpush1.msra.mxu0 0.0
        %788 = vmatprep.subr.mxu0 0.0
        %789 = vmatpush1.msra.mxu0 0.0
        %790 = vmatprep.subr.mxu0 0.0
        %791 = vmatpush1.msra.mxu0 0.0
        %792 = vmatprep.subr.mxu0 0.0
        %793 = vmatpush1.msra.mxu0 0.0
        %794 = vmatprep.subr.mxu0 0.0
        %795 = vmatpush1.msra.mxu0 0.0
        %796 = vmatprep.subr.mxu0 0.0
        %797 = vmatpush1.msra.mxu0 0.0
        %798 = vmatprep.subr.mxu0 0.0
        %799 = vmatpush1.msra.mxu0 0.0
        %800 = vmatprep.subr.mxu0 0.0
        %801 = vmatpush1.msra.mxu0 0.0
        %802 = vmatprep.subr.mxu0 0.0
        %803 = vmatpush1.msra.mxu0 0.0
        %804 = vmatprep.subr.mxu0 0.0
        %805 = vmatpush1.msra.mxu0 0.0
        %806 = vmatprep.subr.mxu0 0.0
        %807 = vmatpush1.msra.mxu0 0.0
        %808 = vmatprep.subr.mxu0 0.0
        %809 = vmatpush1.msra.mxu0 0.0
        %810 = vmatprep.subr.mxu0 0.0
        %811 = vmatpush1.msra.mxu0 0.0
        %812 = vmatprep.mubr.f32.mxu0 0.0
        %813 = vmatmul.mubr.f32.gmra.mrb[0].mxu0 %v742
        %v814 = vpop.f32.mrb[0].mxu0
        %v815 = vadd.f32 0.0, %v814
        %v816 = vpop.f32.mrb[0].mxu0
        %v817 = vadd.f32 0.0, %v816
        %818 = vdwg.mxu0
        %v819 = vadd.f32 %v739, %v815
        %v820 = vadd.f32 %v740, %v817
        %821 = vrot.lane.b32.xlu0 %v337, 127
        %v822 = vpop.permute.xlu0 %821
        %823 = vrot.lane.b32.xlu0 %v339, 127
        %v824 = vpop.permute.xlu0 %823
        %vm825 = vcmp.lt.s32.totalorder %v346, 127
        %v826 = vsel %vm825, %v822, %v824
        %v827 = vsel %vm825, %v824, %v822
        %v828 = vlaneseq
        %v829 = vshrl.u32 %v828, 7
        %v830 = vsub.s32 5, %v829
        %v831 = vrot.slane %v223, %v830
        %v832 = vlaneseq
        %v833 = vshrl.u32 %v832, 7
        %v834 = vsub.s32 5, %v833
        %v835 = vrot.slane %v224, %v834
        %v836 = vmul.f32 %v826, %v831
        %v837 = vmul.f32 %v827, %v835
        %v839 = vsel %vm360, %v237, 0
        %v842 = vsel %vm364, %v836, 0
        %v845 = vsel %vm364, %v837, 0
        %847 = vmatprep.subr.mxu0 %v845
        %848 = vmatpush1.msra.mxu0 %v842
        %849 = vmatprep.subr.mxu0 0.0
        %850 = vmatpush1.msra.mxu0 0.0
        %851 = vmatprep.subr.mxu0 0.0
        %852 = vmatpush1.msra.mxu0 0.0
        %853 = vmatprep.subr.mxu0 0.0
        %854 = vmatpush1.msra.mxu0 0.0
        %855 = vmatprep.subr.mxu0 0.0
        %856 = vmatpush1.msra.mxu0 0.0
        %857 = vmatprep.subr.mxu0 0.0
        %858 = vmatpush1.msra.mxu0 0.0
        %859 = vmatprep.subr.mxu0 0.0
        %860 = vmatpush1.msra.mxu0 0.0
        %861 = vmatprep.subr.mxu0 0.0
        %862 = vmatpush1.msra.mxu0 0.0
        %863 = vmatprep.subr.mxu0 0.0
        %864 = vmatpush1.msra.mxu0 0.0
        %865 = vmatprep.subr.mxu0 0.0
        %866 = vmatpush1.msra.mxu0 0.0
        %867 = vmatprep.subr.mxu0 0.0
        %868 = vmatpush1.msra.mxu0 0.0
        %869 = vmatprep.subr.mxu0 0.0
        %870 = vmatpush1.msra.mxu0 0.0
        %871 = vmatprep.subr.mxu0 0.0
        %872 = vmatpush1.msra.mxu0 0.0
        %873 = vmatprep.subr.mxu0 0.0
        %874 = vmatpush1.msra.mxu0 0.0
        %875 = vmatprep.subr.mxu0 0.0
        %876 = vmatpush1.msra.mxu0 0.0
        %877 = vmatprep.subr.mxu0 0.0
        %878 = vmatpush1.msra.mxu0 0.0
        %879 = vmatprep.subr.mxu0 0.0
        %880 = vmatpush1.msra.mxu0 0.0
        %881 = vmatprep.subr.mxu0 0.0
        %882 = vmatpush1.msra.mxu0 0.0
        %883 = vmatprep.subr.mxu0 0.0
        %884 = vmatpush1.msra.mxu0 0.0
        %885 = vmatprep.subr.mxu0 0.0
        %886 = vmatpush1.msra.mxu0 0.0
        %887 = vmatprep.subr.mxu0 0.0
        %888 = vmatpush1.msra.mxu0 0.0
        %889 = vmatprep.subr.mxu0 0.0
        %890 = vmatpush1.msra.mxu0 0.0
        %891 = vmatprep.subr.mxu0 0.0
        %892 = vmatpush1.msra.mxu0 0.0
        %893 = vmatprep.subr.mxu0 0.0
        %894 = vmatpush1.msra.mxu0 0.0
        %895 = vmatprep.subr.mxu0 0.0
        %896 = vmatpush1.msra.mxu0 0.0
        %897 = vmatprep.subr.mxu0 0.0
        %898 = vmatpush1.msra.mxu0 0.0
        %899 = vmatprep.subr.mxu0 0.0
        %900 = vmatpush1.msra.mxu0 0.0
        %901 = vmatprep.subr.mxu0 0.0
        %902 = vmatpush1.msra.mxu0 0.0
        %903 = vmatprep.subr.mxu0 0.0
        %904 = vmatpush1.msra.mxu0 0.0
        %905 = vmatprep.subr.mxu0 0.0
        %906 = vmatpush1.msra.mxu0 0.0
        %907 = vmatprep.subr.mxu0 0.0
        %908 = vmatpush1.msra.mxu0 0.0
        %909 = vmatprep.subr.mxu0 0.0
        %910 = vmatpush1.msra.mxu0 0.0
        %911 = vmatprep.mubr.f32.mxu0 0.0
        %912 = vmatmul.mubr.f32.gmra.mrb[0].mxu0 %v839
        %v913 = vpop.f32.mrb[0].mxu0
        %v914 = vadd.f32 0.0, %v913
        %v915 = vpop.f32.mrb[0].mxu0
        %v916 = vadd.f32 0.0, %v915
        %917 = vdwg.mxu0
        %v918 = vadd.f32 %v819, %v914
        %v919 = vadd.f32 %v820, %v916
        %920 = vrot.lane.b32.xlu0 %v337, 113
        %v921 = vpop.permute.xlu0 %920
        %922 = vrot.lane.b32.xlu0 %v339, 113
        %v923 = vpop.permute.xlu0 %922
        %vm924 = vcmp.lt.s32.totalorder %v346, 113
        %v925 = vsel %vm924, %v921, %v923
        %v926 = vsel %vm924, %v923, %v921
        %v927 = vlaneseq
        %v928 = vshrl.u32 %v927, 7
        %v929 = vsub.s32 6, %v928
        %v930 = vrot.slane %v223, %v929
        %v931 = vlaneseq
        %v932 = vshrl.u32 %v931, 7
        %v933 = vsub.s32 6, %v932
        %v934 = vrot.slane %v224, %v933
        %v935 = vmul.f32 %v925, %v930
        %v936 = vmul.f32 %v926, %v934
        %v938 = vsel %vm360, %v239, 0
        %v941 = vsel %vm364, %v935, 0
        %v944 = vsel %vm364, %v936, 0
        %946 = vmatprep.subr.mxu0 %v944
        %947 = vmatpush1.msra.mxu0 %v941
        %948 = vmatprep.subr.mxu0 0.0
        %949 = vmatpush1.msra.mxu0 0.0
        %950 = vmatprep.subr.mxu0 0.0
        %951 = vmatpush1.msra.mxu0 0.0
        %952 = vmatprep.subr.mxu0 0.0
        %953 = vmatpush1.msra.mxu0 0.0
        %954 = vmatprep.subr.mxu0 0.0
        %955 = vmatpush1.msra.mxu0 0.0
        %956 = vmatprep.subr.mxu0 0.0
        %957 = vmatpush1.msra.mxu0 0.0
        %958 = vmatprep.subr.mxu0 0.0
        %959 = vmatpush1.msra.mxu0 0.0
        %960 = vmatprep.subr.mxu0 0.0
        %961 = vmatpush1.msra.mxu0 0.0
        %962 = vmatprep.subr.mxu0 0.0
        %963 = vmatpush1.msra.mxu0 0.0
        %964 = vmatprep.subr.mxu0 0.0
        %965 = vmatpush1.msra.mxu0 0.0
        %966 = vmatprep.subr.mxu0 0.0
        %967 = vmatpush1.msra.mxu0 0.0
        %968 = vmatprep.subr.mxu0 0.0
        %969 = vmatpush1.msra.mxu0 0.0
        %970 = vmatprep.subr.mxu0 0.0
        %971 = vmatpush1.msra.mxu0 0.0
        %972 = vmatprep.subr.mxu0 0.0
        %973 = vmatpush1.msra.mxu0 0.0
        %974 = vmatprep.subr.mxu0 0.0
        %975 = vmatpush1.msra.mxu0 0.0
        %976 = vmatprep.subr.mxu0 0.0
        %977 = vmatpush1.msra.mxu0 0.0
        %978 = vmatprep.subr.mxu0 0.0
        %979 = vmatpush1.msra.mxu0 0.0
        %980 = vmatprep.subr.mxu0 0.0
        %981 = vmatpush1.msra.mxu0 0.0
        %982 = vmatprep.subr.mxu0 0.0
        %983 = vmatpush1.msra.mxu0 0.0
        %984 = vmatprep.subr.mxu0 0.0
        %985 = vmatpush1.msra.mxu0 0.0
        %986 = vmatprep.subr.mxu0 0.0
        %987 = vmatpush1.msra.mxu0 0.0
        %988 = vmatprep.subr.mxu0 0.0
        %989 = vmatpush1.msra.mxu0 0.0
        %990 = vmatprep.subr.mxu0 0.0
        %991 = vmatpush1.msra.mxu0 0.0
        %992 = vmatprep.subr.mxu0 0.0
        %993 = vmatpush1.msra.mxu0 0.0
        %994 = vmatprep.subr.mxu0 0.0
        %995 = vmatpush1.msra.mxu0 0.0
        %996 = vmatprep.subr.mxu0 0.0
        %997 = vmatpush1.msra.mxu0 0.0
        %998 = vmatprep.subr.mxu0 0.0
        %999 = vmatpush1.msra.mxu0 0.0
        %1000 = vmatprep.subr.mxu0 0.0
        %1001 = vmatpush1.msra.mxu0 0.0
        %1002 = vmatprep.subr.mxu0 0.0
        %1003 = vmatpush1.msra.mxu0 0.0
        %1004 = vmatprep.subr.mxu0 0.0
        %1005 = vmatpush1.msra.mxu0 0.0
        %1006 = vmatprep.subr.mxu0 0.0
        %1007 = vmatpush1.msra.mxu0 0.0
        %1008 = vmatprep.subr.mxu0 0.0
        %1009 = vmatpush1.msra.mxu0 0.0
        %1010 = vmatprep.mubr.f32.mxu0 0.0
        %1011 = vmatmul.mubr.f32.gmra.mrb[0].mxu0 %v938
        %v1012 = vpop.f32.mrb[0].mxu0
        %v1013 = vadd.f32 0.0, %v1012
        %v1014 = vpop.f32.mrb[0].mxu0
        %v1015 = vadd.f32 0.0, %v1014
        %1016 = vdwg.mxu0
        %v1017 = vadd.f32 %v918, %v1013
        %v1018 = vadd.f32 %v919, %v1015
        %1019 = vrot.lane.b32.xlu0 %v337, 112
        %v1020 = vpop.permute.xlu0 %1019
        %1021 = vrot.lane.b32.xlu0 %v339, 112
        %v1022 = vpop.permute.xlu0 %1021
        %vm1023 = vcmp.lt.s32.totalorder %v346, 112
        %v1024 = vsel %vm1023, %v1020, %v1022
        %v1025 = vsel %vm1023, %v1022, %v1020
        %v1026 = vlaneseq
        %v1027 = vshrl.u32 %v1026, 7
        %v1028 = vsub.s32 7, %v1027
        %v1029 = vrot.slane %v223, %v1028
        %v1030 = vlaneseq
        %v1031 = vshrl.u32 %v1030, 7
        %v1032 = vsub.s32 7, %v1031
        %v1033 = vrot.slane %v224, %v1032
        %v1034 = vmul.f32 %v1024, %v1029
        %v1035 = vmul.f32 %v1025, %v1033
        %v1037 = vsel %vm360, %v241, 0
        %v1040 = vsel %vm364, %v1034, 0
        %v1043 = vsel %vm364, %v1035, 0
        %1045 = vmatprep.subr.mxu0 %v1043
        %1046 = vmatpush1.msra.mxu0 %v1040
        %1047 = vmatprep.subr.mxu0 0.0
        %1048 = vmatpush1.msra.mxu0 0.0
        %1049 = vmatprep.subr.mxu0 0.0
        %1050 = vmatpush1.msra.mxu0 0.0
        %1051 = vmatprep.subr.mxu0 0.0
        %1052 = vmatpush1.msra.mxu0 0.0
        %1053 = vmatprep.subr.mxu0 0.0
        %1054 = vmatpush1.msra.mxu0 0.0
        %1055 = vmatprep.subr.mxu0 0.0
        %1056 = vmatpush1.msra.mxu0 0.0
        %1057 = vmatprep.subr.mxu0 0.0
        %1058 = vmatpush1.msra.mxu0 0.0
        %1059 = vmatprep.subr.mxu0 0.0
        %1060 = vmatpush1.msra.mxu0 0.0
        %1061 = vmatprep.subr.mxu0 0.0
        %1062 = vmatpush1.msra.mxu0 0.0
        %1063 = vmatprep.subr.mxu0 0.0
        %1064 = vmatpush1.msra.mxu0 0.0
        %1065 = vmatprep.subr.mxu0 0.0
        %1066 = vmatpush1.msra.mxu0 0.0
        %1067 = vmatprep.subr.mxu0 0.0
        %1068 = vmatpush1.msra.mxu0 0.0
        %1069 = vmatprep.subr.mxu0 0.0
        %1070 = vmatpush1.msra.mxu0 0.0
        %1071 = vmatprep.subr.mxu0 0.0
        %1072 = vmatpush1.msra.mxu0 0.0
        %1073 = vmatprep.subr.mxu0 0.0
        %1074 = vmatpush1.msra.mxu0 0.0
        %1075 = vmatprep.subr.mxu0 0.0
        %1076 = vmatpush1.msra.mxu0 0.0
        %1077 = vmatprep.subr.mxu0 0.0
        %1078 = vmatpush1.msra.mxu0 0.0
        %1079 = vmatprep.subr.mxu0 0.0
        %1080 = vmatpush1.msra.mxu0 0.0
        %1081 = vmatprep.subr.mxu0 0.0
        %1082 = vmatpush1.msra.mxu0 0.0
        %1083 = vmatprep.subr.mxu0 0.0
        %1084 = vmatpush1.msra.mxu0 0.0
        %1085 = vmatprep.subr.mxu0 0.0
        %1086 = vmatpush1.msra.mxu0 0.0
        %1087 = vmatprep.subr.mxu0 0.0
        %1088 = vmatpush1.msra.mxu0 0.0
        %1089 = vmatprep.subr.mxu0 0.0
        %1090 = vmatpush1.msra.mxu0 0.0
        %1091 = vmatprep.subr.mxu0 0.0
        %1092 = vmatpush1.msra.mxu0 0.0
        %1093 = vmatprep.subr.mxu0 0.0
        %1094 = vmatpush1.msra.mxu0 0.0
        %1095 = vmatprep.subr.mxu0 0.0
        %1096 = vmatpush1.msra.mxu0 0.0
        %1097 = vmatprep.subr.mxu0 0.0
        %1098 = vmatpush1.msra.mxu0 0.0
        %1099 = vmatprep.subr.mxu0 0.0
        %1100 = vmatpush1.msra.mxu0 0.0
        %1101 = vmatprep.subr.mxu0 0.0
        %1102 = vmatpush1.msra.mxu0 0.0
        %1103 = vmatprep.subr.mxu0 0.0
        %1104 = vmatpush1.msra.mxu0 0.0
        %1105 = vmatprep.subr.mxu0 0.0
        %1106 = vmatpush1.msra.mxu0 0.0
        %1107 = vmatprep.subr.mxu0 0.0
        %1108 = vmatpush1.msra.mxu0 0.0
        %1109 = vmatprep.mubr.f32.mxu0 0.0
        %1110 = vmatmul.mubr.f32.gmra.mrb[0].mxu0 %v1037
        %v1111 = vpop.f32.mrb[0].mxu0
        %v1112 = vadd.f32 0.0, %v1111
        %v1113 = vpop.f32.mrb[0].mxu0
        %v1114 = vadd.f32 0.0, %v1113
        %1115 = vdwg.mxu0
        %v1116 = vadd.f32 %v1017, %v1112
        %v1117 = vadd.f32 %v1018, %v1114
        %1118 = vrot.lane.b32.xlu0 %v337, 111
        %v1119 = vpop.permute.xlu0 %1118
        %1120 = vrot.lane.b32.xlu0 %v339, 111
        %v1121 = vpop.permute.xlu0 %1120
        %vm1122 = vcmp.lt.s32.totalorder %v346, 111
        %v1123 = vsel %vm1122, %v1119, %v1121
        %v1124 = vsel %vm1122, %v1121, %v1119
        %v1125 = vlaneseq
        %v1126 = vshrl.u32 %v1125, 7
        %v1127 = vsub.s32 0, %v1126
        %v1128 = vrot.slane %v225, %v1127
        %v1129 = vlaneseq
        %v1130 = vshrl.u32 %v1129, 7
        %v1131 = vsub.s32 0, %v1130
        %v1132 = vrot.slane %v226, %v1131
        %v1133 = vmul.f32 %v1123, %v1128
        %v1134 = vmul.f32 %v1124, %v1132
        %v1136 = vsel %vm360, %v243, 0
        %v1139 = vsel %vm364, %v1133, 0
        %v1142 = vsel %vm364, %v1134, 0
        %1144 = vmatprep.subr.mxu0 %v1142
        %1145 = vmatpush1.msra.mxu0 %v1139
        %1146 = vmatprep.subr.mxu0 0.0
        %1147 = vmatpush1.msra.mxu0 0.0
        %1148 = vmatprep.subr.mxu0 0.0
        %1149 = vmatpush1.msra.mxu0 0.0
        %1150 = vmatprep.subr.mxu0 0.0
        %1151 = vmatpush1.msra.mxu0 0.0
        %1152 = vmatprep.subr.mxu0 0.0
        %1153 = vmatpush1.msra.mxu0 0.0
        %1154 = vmatprep.subr.mxu0 0.0
        %1155 = vmatpush1.msra.mxu0 0.0
        %1156 = vmatprep.subr.mxu0 0.0
        %1157 = vmatpush1.msra.mxu0 0.0
        %1158 = vmatprep.subr.mxu0 0.0
        %1159 = vmatpush1.msra.mxu0 0.0
        %1160 = vmatprep.subr.mxu0 0.0
        %1161 = vmatpush1.msra.mxu0 0.0
        %1162 = vmatprep.subr.mxu0 0.0
        %1163 = vmatpush1.msra.mxu0 0.0
        %1164 = vmatprep.subr.mxu0 0.0
        %1165 = vmatpush1.msra.mxu0 0.0
        %1166 = vmatprep.subr.mxu0 0.0
        %1167 = vmatpush1.msra.mxu0 0.0
        %1168 = vmatprep.subr.mxu0 0.0
        %1169 = vmatpush1.msra.mxu0 0.0
        %1170 = vmatprep.subr.mxu0 0.0
        %1171 = vmatpush1.msra.mxu0 0.0
        %1172 = vmatprep.subr.mxu0 0.0
        %1173 = vmatpush1.msra.mxu0 0.0
        %1174 = vmatprep.subr.mxu0 0.0
        %1175 = vmatpush1.msra.mxu0 0.0
        %1176 = vmatprep.subr.mxu0 0.0
        %1177 = vmatpush1.msra.mxu0 0.0
        %1178 = vmatprep.subr.mxu0 0.0
        %1179 = vmatpush1.msra.mxu0 0.0
        %1180 = vmatprep.subr.mxu0 0.0
        %1181 = vmatpush1.msra.mxu0 0.0
        %1182 = vmatprep.subr.mxu0 0.0
        %1183 = vmatpush1.msra.mxu0 0.0
        %1184 = vmatprep.subr.mxu0 0.0
        %1185 = vmatpush1.msra.mxu0 0.0
        %1186 = vmatprep.subr.mxu0 0.0
        %1187 = vmatpush1.msra.mxu0 0.0
        %1188 = vmatprep.subr.mxu0 0.0
        %1189 = vmatpush1.msra.mxu0 0.0
        %1190 = vmatprep.subr.mxu0 0.0
        %1191 = vmatpush1.msra.mxu0 0.0
        %1192 = vmatprep.subr.mxu0 0.0
        %1193 = vmatpush1.msra.mxu0 0.0
        %1194 = vmatprep.subr.mxu0 0.0
        %1195 = vmatpush1.msra.mxu0 0.0
        %1196 = vmatprep.subr.mxu0 0.0
        %1197 = vmatpush1.msra.mxu0 0.0
        %1198 = vmatprep.subr.mxu0 0.0
        %1199 = vmatpush1.msra.mxu0 0.0
        %1200 = vmatprep.subr.mxu0 0.0
        %1201 = vmatpush1.msra.mxu0 0.0
        %1202 = vmatprep.subr.mxu0 0.0
        %1203 = vmatpush1.msra.mxu0 0.0
        %1204 = vmatprep.subr.mxu0 0.0
        %1205 = vmatpush1.msra.mxu0 0.0
        %1206 = vmatprep.subr.mxu0 0.0
        %1207 = vmatpush1.msra.mxu0 0.0
        %1208 = vmatprep.mubr.f32.mxu0 0.0
        %1209 = vmatmul.mubr.f32.gmra.mrb[0].mxu0 %v1136
        %v1210 = vpop.f32.mrb[0].mxu0
        %v1211 = vadd.f32 0.0, %v1210
        %v1212 = vpop.f32.mrb[0].mxu0
        %v1213 = vadd.f32 0.0, %v1212
        %1214 = vdwg.mxu0
        %v1215 = vadd.f32 %v1116, %v1211
        %v1216 = vadd.f32 %v1117, %v1213
        %1217 = vst [vmem:[%s217] sm:$0xff] %v1215
        %1218 = vst [vmem:[%s217 + $0x8] sm:$0xff] %v1216
        %s1219 = sand.u32 %s137, 1
        %s1220 = scalar_lea.sflag [#allocation3], %s1219
        %s1221 = sand.u32 %s137, 1
        %s1222 = smul.addr %s1221, 16
        %s1223 = scalar_lea.vmem [#allocation2], %s1222
        // Predicated region
        $region41: #{tpu_custom_call.1} parent=39 // pred_check
          %p1224 = pneg %p147
        $region42: #{tpu_custom_call.1} parent=39 // pred_check_branch
          %1226 = sbr.rel (%p1224) target = $region44
        $region43: #{tpu_custom_call.1} parent=39 // pred_region
          %s1228 = ssub.s32 256, 256
          %1229 = vsyncadd %s1220, %s1228
          %s1230 = smul.addr %s19, 2
          %s1231 = smul.addr %s1230, 128
          %s1232 = scalar_lea.hbm %s5, %s1231
          %s1234 = sshll.u32 %s1223, 4
          %s1235 = int_to_ptr.vmem [resolvable:$true] %s1234
          %1237 = dma.vmem_to_hbm [thread:$0]  %s1235, 256, %s1232, %s1220
        $region44: #{tpu_custom_call.1} parent=39 // pred_fallthru
          _
      $region40: #{tpu_custom_call.1} parent=5 // pred_fallthru
        _
      %p1238 = scmp.le.s32.totalorder 2, %s14
      // Predicated region
      $region45: #{tpu_custom_call.1} parent=5 // pred_check
        %p1239 = pneg %p1238
      $region46: #{tpu_custom_call.1} parent=5 // pred_check_branch
        %1241 = sbr.rel (%p1239) target = $region48
      $region47: #{tpu_custom_call.1} parent=5 // pred_region
        %s1242 = ssub.s32 %s14, 2
        // Predicated region
        $region49: #{tpu_custom_call.1} parent=47 // pred_check
          %p1243 = pneg %p153
        $region50: #{tpu_custom_call.1} parent=47 // pred_check_branch
          %1245 = sbr.rel (%p1243) target = $region52
        $region51: #{tpu_custom_call.1} parent=47 // pred_region
          %s1246 = sand.u32 %s138, 1
          %s1247 = scalar_lea.sflag [#allocation3], %s1246
          %s1248 = sand.u32 %s138, 1
          %s1249 = smul.addr %s1248, 16
          %s1250 = scalar_lea.vmem [#allocation2], %s1249
          %1251 = dma.done %s1247, 256
        $region52: #{tpu_custom_call.1} parent=47 // pred_fallthru
          _
      $region48: #{tpu_custom_call.1} parent=5 // pred_fallthru
        _
    $region6: #{tpu_custom_call.1} parent=1 // loop_footer
      %s18 = sadd.s32 1, %s14
    $region7: #{tpu_custom_call.1} parent=1 // loop_footer_branch
      %13 = sbr.rel target = $region3
    $region8: #{tpu_custom_call.1} parent=1 // loop_exit
      _
    %1252 = vsyncpa [#allocation3], 1
    %s1253 = scalar_lea.sflag [#allocation3], 1
    %1254 = vsyncpa %s1253, 1

</llo_original>
